<compile_context>
chip_gen: v6e
topology: v6e:2x2x1
jax: 0.10.0
libtpu: 0.0.40
codegen_flags: <defaults>
</compile_context>

<pallas_src>
import functools

import jax
import jax.numpy as jnp
from jax.experimental import pallas as pl
from jax.experimental.pallas import tpu as pltpu


def _nll2d_kernel(x_ref, t_ref, out_ref, acc_ref, *, hw, tile_p, inner_tiles,
                  needs_mask):
    """One (batch, outer-pixel-tile, inner-pixel-tile) grid step.

    x_ref:   (C, TILE_P)  log-probabilities, native dtype (pixels on lanes)
    t_ref:   (1, TILE_P)  integer target class ids (native integer dtype)
    out_ref: (1, 1)       f32 partial for this (n, outer) slab: sum -log p[t]
    acc_ref: (1, TILE_P)  f32 per-lane accumulator (VMEM scratch)
    """
    pi = pl.program_id(2)

    @pl.when(pi == 0)
    def _init():
        acc_ref[...] = jnp.zeros_like(acc_ref)

    x = x_ref[...]                                                # (C, TILE_P)
    t = t_ref[...].astype(jnp.int32)                              # (1, TILE_P)
    c = x.shape[0]

    if needs_mask:
        # Fold ragged-tile validity into the target row: OOB lanes -> class -1,
        # which never matches the [0, C) iota below, so they contribute 0.
        po = pl.program_id(1)
        lane = jax.lax.broadcasted_iota(jnp.int32, (1, tile_p), 1)
        gidx = (po * inner_tiles + pi) * tile_p + lane
        t = jnp.where(gidx < hw, t, jnp.int32(-1))

    # One-hot select over the class (sublane) axis, in native dtype.
    cls = jax.lax.broadcasted_iota(jnp.int32, (c, tile_p), 0)     # (C, TILE_P)
    sel = cls == t                                                # (C, TILE_P)
    picked = jnp.where(sel, x, jnp.zeros_like(x))                 # native dtype

    # Class-axis reduce is exact (at most one non-zero term per lane); only the
    # reduced row is upcast to f32 and accumulated -> one vreg-row of vst/vld
    # traffic per 128 lanes instead of ~C/8 rows.
    row = jnp.sum(picked, axis=0, keepdims=True)                  # (1, TILE_P)
    acc_ref[...] += row.astype(jnp.float32)

    @pl.when(pi == pl.num_programs(2) - 1)
    def _finalize():
        out_ref[...] = -jnp.sum(acc_ref[...], keepdims=True)      # (1, 1)


def _padded_sublanes(rows, dtype):
    """Rows after TPU sublane padding (8 for 32-bit, 16 for bf16, 32 for i8)."""
    itemsize = jnp.dtype(dtype).itemsize
    pack = 8 * max(1, 4 // itemsize)
    return ((rows + pack - 1) // pack) * pack


def cross_entropy_loss_2d(log_probs_nchw, targets_nhw, size_average=True,
                          target_block_bytes=4 << 20):
    """Pallas equivalent of CrossEntropyLoss2d().forward(inputs, targets).

    log_probs_nchw: (N, C, H, W) float — log-probabilities (the PyTorch module
                    applies NLLLoss2d directly to its inputs).
    targets_nhw:    (N, H, W) integer class ids in [0, C).
    Returns a float32 scalar.

    Note: targets outside [0, C) contribute 0 to the numerator but are still
    counted in the N*H*W divisor (no ignore_index support, matching the module
    defaults).
    """
    N, C, H, W = log_probs_nchw.shape
    HW = H * W

    # Free views: keep native layout and dtypes, no extra HBM passes.
    x = log_probs_nchw.reshape(N, C, HW)
    t = targets_nhw.reshape(N, 1, HW)
    if not jnp.issubdtype(t.dtype, jnp.integer):
        t = t.astype(jnp.int32)

    x_itemsize = jnp.dtype(x.dtype).itemsize
    t_itemsize = jnp.dtype(t.dtype).itemsize

    # Lane-dense pixel tile sized from the *padded* VMEM footprint of an x
    # block: ceil(C/pack)*pack sublanes, ~target_block_bytes total, multiple of
    # 128 lanes. A single full-width tile if the image already fits.
    padded_c = _padded_sublanes(C, x.dtype)
    tile_p = (target_block_bytes // (padded_c * x_itemsize)) // 128 * 128
    tile_p = max(128, tile_p)
    if tile_p >= HW:
        tile_p = HW                  # block == full dim: always layout-legal
    needs_mask = (HW % tile_p) != 0

    total_tiles = pl.cdiv(HW, tile_p)
    # Split the pixel-tile axis into (outer, inner) so the outer axis can be
    # marked "parallel": keeps v7x's second TensorCore busy when N is small.
    # (No measurable cost on single-TC v5e/v6e.)
    p_outer = 1
    if N < 4 and total_tiles > 1:
        for cand in (4, 3, 2):
            if total_tiles % cand == 0:
                p_outer = cand
                break
    p_inner = total_tiles // p_outer

    # VMEM accounting with sublane padding: x double-buffered, t double-
    # buffered, f32 accumulator row (padded to 8 sublanes).
    x_blk_bytes = padded_c * tile_p * x_itemsize
    t_blk_bytes = _padded_sublanes(1, t.dtype) * tile_p * t_itemsize
    acc_bytes = 8 * tile_p * 4
    vmem_need = 2 * x_blk_bytes + 2 * t_blk_bytes + acc_bytes
    vmem_limit = max(16 << 20, int(vmem_need * 1.25) + (4 << 20))
    vmem_limit = min(vmem_limit, 64 << 20)   # stay inside v7x physical VMEM

    kernel = functools.partial(_nll2d_kernel, hw=HW, tile_p=tile_p,
                               inner_tiles=p_inner, needs_mask=needs_mask)

    partials = pl.pallas_call(
        kernel,
        out_shape=jax.ShapeDtypeStruct((N, p_outer, 1, 1), jnp.float32),
        grid_spec=pltpu.PrefetchScalarGridSpec(
            num_scalar_prefetch=0,
            grid=(N, p_outer, p_inner),
            in_specs=[
                pl.BlockSpec((None, C, tile_p),
                             lambda n, po, pi: (n, 0, po * p_inner + pi)),
                pl.BlockSpec((None, 1, tile_p),
                             lambda n, po, pi: (n, 0, po * p_inner + pi)),
            ],
            out_specs=pl.BlockSpec((None, None, 1, 1),
                                   lambda n, po, pi: (n, po, 0, 0)),
            scratch_shapes=[pltpu.VMEM((1, tile_p), jnp.float32)],
        ),
        compiler_params=pltpu.CompilerParams(
            # batch + outer pixel tiles parallel (megacore), inner/reduction
            # axis arbitrary (last).
            dimension_semantics=("parallel", "parallel", "arbitrary"),
            vmem_limit_bytes=vmem_limit,
        ),
        # TODO(synk): if xprof shows exposed DMA at step boundaries on v7x, add
        # pipeline_mode=pl.Buffered(3) to the x BlockSpec.
    )(x, t)

    total = jnp.sum(partials)              # sum per-(batch, outer-tile) partials
    if size_average:
        return total / jnp.float32(N * H * W)
    return total


def _reference(log_probs_nchw, targets_nhw, size_average=True):
    # Pure-JAX reference for validation.
    N, C, H, W = log_probs_nchw.shape
    x = jnp.transpose(log_probs_nchw, (0, 2, 3, 1)).astype(jnp.float32)  # NHWC
    picked = jnp.take_along_axis(
        x, targets_nhw[..., None].astype(jnp.int32), axis=-1)
    total = -jnp.sum(picked)
    return total / (N * H * W) if size_average else total


if __name__ == "__main__":
    key = jax.random.PRNGKey(0)

    # Check 1: canonical small shapes (single full-width tile path).
    k1, k2, k3, k4 = jax.random.split(key, 4)
    N, C, H, W = 2, 4, 16, 16
    logits = jax.random.normal(k1, (N, C, H, W), dtype=jnp.float32)
    log_probs = jax.nn.log_softmax(logits, axis=1)   # module expects log-probs
    targets = jax.random.randint(k2, (N, H, W), 0, C, dtype=jnp.int32)

    loss = jax.block_until_ready(cross_entropy_loss_2d(log_probs, targets))
    ref = _reference(log_probs, targets)
    assert jnp.allclose(loss, ref, rtol=1e-5, atol=1e-5), (loss, ref)

    # Check 2: multi-tile path with ragged last tile, odd C, parallel outer
    # pixel-tile axis (forced small tiles via target_block_bytes).
    N2, C2, H2, W2 = 1, 5, 13, 11
    logits2 = jax.random.normal(k3, (N2, C2, H2, W2), dtype=jnp.float32)
    log_probs2 = jax.nn.log_softmax(logits2, axis=1)
    targets2 = jax.random.randint(k4, (N2, H2, W2), 0, C2, dtype=jnp.int32)

    loss2 = jax.block_until_ready(
        cross_entropy_loss_2d(log_probs2, targets2, target_block_bytes=4096))
    ref2 = _reference(log_probs2, targets2)
    assert jnp.allclose(loss2, ref2, rtol=1e-5, atol=1e-5), (loss2, ref2)

    # TODO(synk): per-class `weight` tensor (module default weight=None) is not
    # implemented; with weights the divisor becomes the sum of picked weights.
    print("KERNEL_OK")
</pallas_src>

<mosaic_0001>
module attributes {stable_mosaic.version = 11 : i64} {
  func.func @_nll2d_kernel(%arg0: i32, %arg1: i32, %arg2: i32, %arg3: memref<1x4x256xf32, #tpu.memory_space<vmem>>, %arg4: memref<1x1x256xi32, #tpu.memory_space<vmem>>, %arg5: memref<1x1x1x1xf32, #tpu.memory_space<vmem>>, %arg6: memref<1x256xf32, #tpu.memory_space<vmem>>) attributes {dimension_semantics = [#tpu.dimension_semantics<parallel>, #tpu.dimension_semantics<parallel>, #tpu.dimension_semantics<arbitrary>], iteration_bounds = array<i64: 2, 1, 1>, scalar_prefetch = 0 : i64, scratch_operands = 1 : i64, tpu.core_type = #tpu.core_type<tc>, window_params = [{transform_indices = @transform_0, window_bounds = array<i64: 1, 4, 256>}, {transform_indices = @transform_1, window_bounds = array<i64: 1, 1, 256>}, {transform_indices = @transform_2, window_bounds = array<i64: 1, 1, 1, 1>}]} {
    %c0_i32 = arith.constant 0 : i32
    %0 = arith.cmpi eq, %arg2, %c0_i32 : i32
    %1 = arith.extui %0 : i1 to i32
    %c0_i32_0 = arith.constant 0 : i32
    %2 = arith.cmpi ne, %1, %c0_i32_0 : i32
    scf.if %2 {
      %cst_13 = arith.constant 0.000000e+00 : f32
      %20 = vector.broadcast %cst_13 : f32 to vector<1x256xf32>
      %c0_14 = arith.constant 0 : index
      %c0_15 = arith.constant 0 : index
      %21 = vector.load %arg6[%c0_14, %c0_15] : memref<1x256xf32, #tpu.memory_space<vmem>>, vector<1x256xf32>
      tpu.vector_store %arg6[%c0_14, %c0_15], %20 {strides = array<i32>} : memref<1x256xf32, #tpu.memory_space<vmem>>, vector<1x256xf32>,
    } else {
    }
    %c0 = arith.constant 0 : index
    %c0_1 = arith.constant 0 : index
    %c0_2 = arith.constant 0 : index
    %3 = vector.load %arg3[%c0, %c0_1, %c0_2] : memref<1x4x256xf32, #tpu.memory_space<vmem>>, vector<1x4x256xf32>
    %4 = vector.shape_cast %3 : vector<1x4x256xf32> to vector<4x256xf32>
    %c0_3 = arith.constant 0 : index
    %c0_4 = arith.constant 0 : index
    %c0_5 = arith.constant 0 : index
    %5 = vector.load %arg4[%c0_3, %c0_4, %c0_5] : memref<1x1x256xi32, #tpu.memory_space<vmem>>, vector<1x1x256xi32>
    %6 = vector.shape_cast %5 : vector<1x1x256xi32> to vector<1x256xi32>
    %7 = tpu.iota {dimensions = array<i32: 0>} : vector<4x256xi32>
    %8 = vector.broadcast %6 : vector<1x256xi32> to vector<4x256xi32>
    %9 = arith.cmpi eq, %7, %8 : vector<4x256xi32>
    %cst = arith.constant 0.000000e+00 : f32
    %10 = vector.broadcast %cst : f32 to vector<4x256xf32>
    %11 = arith.select %9, %4, %10 : vector<4x256xi1>, vector<4x256xf32>
    %cst_6 = arith.constant dense<0.000000e+00> : vector<256xf32>
    %12 = vector.multi_reduction <add>, %11, %cst_6 [0] : vector<4x256xf32> to vector<256xf32>
    %13 = vector.shape_cast %12 : vector<256xf32> to vector<1x256xf32>
    %c0_7 = arith.constant 0 : index
    %c0_8 = arith.constant 0 : index
    %14 = vector.load %arg6[%c0_7, %c0_8] : memref<1x256xf32, #tpu.memory_space<vmem>>, vector<1x256xf32>
    %15 = arith.addf %14, %13 : vector<1x256xf32>
    %c0_9 = arith.constant 0 : index
    %c0_10 = arith.constant 0 : index
    %16 = vector.load %arg6[%c0_9, %c0_10] : memref<1x256xf32, #tpu.memory_space<vmem>>, vector<1x256xf32>
    tpu.vector_store %arg6[%c0_9, %c0_10], %15 {strides = array<i32>} : memref<1x256xf32, #tpu.memory_space<vmem>>, vector<1x256xf32>,
    %c0_i32_11 = arith.constant 0 : i32
    %17 = arith.cmpi eq, %arg2, %c0_i32_11 : i32
    %18 = arith.extui %17 : i1 to i32
    %c0_i32_12 = arith.constant 0 : i32
    %19 = arith.cmpi ne, %18, %c0_i32_12 : i32
    scf.if %19 {
      %c0_13 = arith.constant 0 : index
      %c0_14 = arith.constant 0 : index
      %20 = vector.load %arg6[%c0_13, %c0_14] : memref<1x256xf32, #tpu.memory_space<vmem>>, vector<1x256xf32>
      %21 = vector.shape_cast %20 : vector<1x256xf32> to vector<1x1x256xf32>
      %cst_15 = arith.constant dense<0.000000e+00> : vector<1xf32>
      %22 = vector.multi_reduction <add>, %21, %cst_15 [1, 2] : vector<1x1x256xf32> to vector<1xf32>
      %23 = vector.shape_cast %22 : vector<1xf32> to vector<1x1x1xf32>
      %24 = vector.extract %23[0, 0, 0] : f32 from vector<1x1x1xf32>
      %25 = vector.broadcast %24 : f32 to vector<1x1xf32>
      %cst_16 = arith.constant 0.000000e+00 : f32
      %26 = vector.broadcast %cst_16 : f32 to vector<1x1xf32>
      %27 = arith.subf %26, %25 : vector<1x1xf32>
      %c0_17 = arith.constant 0 : index
      %c0_18 = arith.constant 0 : index
      %c0_19 = arith.constant 0 : index
      %c0_20 = arith.constant 0 : index
      %28 = vector.load %arg5[%c0_17, %c0_18, %c0_19, %c0_20] : memref<1x1x1x1xf32, #tpu.memory_space<vmem>>, vector<1x1x1x1xf32>
      %29 = vector.shape_cast %28 : vector<1x1x1x1xf32> to vector<1x1xf32>
      %30 = vector.shape_cast %27 : vector<1x1xf32> to vector<1x1x1x1xf32>
      tpu.vector_store %arg5[%c0_17, %c0_18, %c0_19, %c0_20], %30 {strides = array<i32>} : memref<1x1x1x1xf32, #tpu.memory_space<vmem>>, vector<1x1x1x1xf32>,
    } else {
    }
    return
  }
  func.func @transform_0(%arg0: i32, %arg1: i32, %arg2: i32) -> (i32, i32, i32) {
    %c1_i32 = arith.constant 1 : i32
    %0 = arith.muli %arg1, %c1_i32 : i32
    %1 = arith.addi %0, %arg2 : i32
    %c0_i32 = arith.constant 0 : i32
    %c0_i32_0 = arith.constant 0 : i32
    return %arg0, %c0_i32, %1 : i32, i32, i32
  }
  func.func @transform_1(%arg0: i32, %arg1: i32, %arg2: i32) -> (i32, i32, i32) {
    %c1_i32 = arith.constant 1 : i32
    %0 = arith.muli %arg1, %c1_i32 : i32
    %1 = arith.addi %0, %arg2 : i32
    %c0_i32 = arith.constant 0 : i32
    %c0_i32_0 = arith.constant 0 : i32
    return %arg0, %c0_i32, %1 : i32, i32, i32
  }
  func.func @transform_2(%arg0: i32, %arg1: i32, %arg2: i32) -> (i32, i32, i32, i32) {
    %c0_i32 = arith.constant 0 : i32
    %c0_i32_0 = arith.constant 0 : i32
    %c0_i32_1 = arith.constant 0 : i32
    return %arg0, %arg1, %c0_i32, %c0_i32_0 : i32, i32, i32, i32
  }
}

</mosaic_0001>

<llo_original>
// kernel: tpu_custom_call.1
$region0: #{tpu_custom_call.1}
  #allocation0 [shape = 'u32[]', space=smem, size = 0x4, offset = 0x4, fixed_abs, tag = 'smem constant byte address 0x4 - core index']
  #allocation1 [shape = 'u32[144,128]{1,0:T(1,128)}', space=vmem, size = 0x12000, scoped, tag = 'internal scratch']
  #allocation2 [shape = 'f32[1,256]{1,0:T(1,128)}', space=vmem, size = 0x400, scoped, tag = 'scratch operand']
  %s0 = inlined_call_operand.hbm [shape: f32[2,4,256], index: 0, kind: input, shape index: {}]
  %s1 = inlined_call_operand.hbm [shape: s32[2,1,256], index: 1, kind: input, shape index: {}]
  %s2 = inlined_call_operand.vmem [shape: f32[2,1,1,1], index: 2, kind: output, shape index: {}]
  %s3 = sld [smem:[#allocation0]]
  $region57: #{tpu_custom_call.1} parent=0
    _
  %s5 = ssub.s32 1, %s3
  %s6 = scalar_select 0, %s5, %s3
  $region1: #{tpu_custom_call.1} parent=0
    #allocation3 [shape = 'u8[8192]{0}', space=vmem, size = 0x2000, scoped, tag = 'input window, operand 0']
    #allocation4 [shape = 's32[2]{0}', space=sflag, size = 0x8, scoped, tag = 'scoped memory for tpu_custom_call.1']
    #allocation5 [shape = 'u8[2048]{0}', space=vmem, size = 0x800, scoped, tag = 'input window, operand 1']
    #allocation6 [shape = 's32[2]{0}', space=sflag, size = 0x8, scoped, tag = 'scoped memory for tpu_custom_call.1']
    %7 = vsyncpa [#allocation4], 0
    %s8 = scalar_lea.sflag [#allocation4], 1
    %9 = vsyncpa %s8, 0
    %10 = vsyncpa [#allocation6], 0
    %s11 = scalar_lea.sflag [#allocation6], 1
    %12 = vsyncpa %s11, 0
    loop: start=0, step=1, limit=4
    $region2: #{tpu_custom_call.1} parent=1 // loop_pre_header
      _
    $region3: #{tpu_custom_call.1} parent=1 // loop_header
      %s14 = sphi 0, %s18
      %p15 = scmp.ge.s32.totalorder %s14, 4
      %s21 = sphi 0, %s40
      %s22 = sphi 0, %s36
      %s23 = sphi 0, %s32
      %s24 = sphi 0, %s21
      %s25 = sphi 0, %s22
      %s26 = sphi 0, %s23
      %s27 = sphi 0, %s24
      %s28 = sphi 0, %s25
      %s29 = sphi 0, %s26
      %s47 = sphi 0, %s49
      %s50 = sphi 0, %s47
      %s51 = sphi 0, %s50
      %s67 = sphi 0, %s51
      %s77 = sphi 0, %s79
      %s80 = sphi 0, %s77
      %s81 = sphi 0, %s80
      %s97 = sphi 0, %s81
      %s105 = sphi 0, %s107
      %s108 = sphi 0, %s105
      %s109 = sphi 0, %s108
      %s125 = sphi 0, %s109
    $region4: #{tpu_custom_call.1} parent=1 // loop_header_branch
      %17 = sbr.rel (%p15) target = $region8
    $region5: #{tpu_custom_call.1} parent=1 // loop_body
      %s19 = ssub.s32 %s14, 1
      %s20 = ssub.s32 %s14, 2
      %s30 = sadd.s32 1, %s23
      %p31 = scmp.ge.s32.totalorder %s30, 1
      %s32 = scalar_select %p31, 0, %s30
      %s33 = sadd.s32 1, %s22
      %s34 = scalar_select %p31, %s33, %s22
      %p35 = scmp.ge.s32.totalorder %s34, 1
      %s36 = scalar_select %p35, 0, %s34
      %s37 = sadd.s32 1, %s21
      %s38 = scalar_select %p35, %s37, %s21
      %p39 = scmp.ge.s32.totalorder %s38, 2
      %s40 = scalar_select %p39, 0, %s38
      %s41 = sadd.s32 %s22, %s23
      %s42 = sadd.s32 %s36, %s32
      %s43 = ssub.s32 %s21, %s40
      %s44 = ssub.s32 %s41, %s42
      %s45 = sor.u32 %s43, %s44
      %p46 = scmp.eq.s32.totalorder %s45, 0
      %s48 = sadd.s32 %s47, 1
      %s49 = scalar_select %p46, %s47, %s48
      %p52 = pneg %p46
      %p53 = scmp.eq.s32.totalorder %s14, 1
      %p54 = por %p52, %p53
      %p55 = scmp.ne.s32.totalorder %s47, %s50
      %p56 = scmp.eq.s32.totalorder %s14, 0
      %p57 = por %p55, %p56
      %p58 = scmp.ne.s32.totalorder %s47, %s50
      %p59 = scmp.eq.s32.totalorder %s19, 1
      %p60 = por %p58, %p59
      %p61 = scmp.ne.s32.totalorder %s50, %s51
      %p62 = scmp.eq.s32.totalorder %s19, 0
      %p63 = por %p61, %p62
      %p64 = scmp.ne.s32.totalorder %s50, %s51
      %p65 = scmp.eq.s32.totalorder %s20, 1
      %p66 = por %p64, %p65
      %p68 = scmp.ne.s32.totalorder %s51, %s67
      %p69 = scmp.eq.s32.totalorder %s20, 0
      %p70 = por %p68, %p69
      %s71 = sadd.s32 %s22, %s23
      %s72 = sadd.s32 %s36, %s32
      %s73 = ssub.s32 %s21, %s40
      %s74 = ssub.s32 %s71, %s72
      %s75 = sor.u32 %s73, %s74
      %p76 = scmp.eq.s32.totalorder %s75, 0
      %s78 = sadd.s32 %s77, 1
      %s79 = scalar_select %p76, %s77, %s78
      %p82 = pneg %p76
      %p83 = scmp.eq.s32.totalorder %s14, 1
      %p84 = por %p82, %p83
      %p85 = scmp.ne.s32.totalorder %s77, %s80
      %p86 = scmp.eq.s32.totalorder %s14, 0
      %p87 = por %p85, %p86
      %p88 = scmp.ne.s32.totalorder %s77, %s80
      %p89 = scmp.eq.s32.totalorder %s19, 1
      %p90 = por %p88, %p89
      %p91 = scmp.ne.s32.totalorder %s80, %s81
      %p92 = scmp.eq.s32.totalorder %s19, 0
      %p93 = por %p91, %p92
      %p94 = scmp.ne.s32.totalorder %s80, %s81
      %p95 = scmp.eq.s32.totalorder %s20, 1
      %p96 = por %p94, %p95
      %p98 = scmp.ne.s32.totalorder %s81, %s97
      %p99 = scmp.eq.s32.totalorder %s20, 0
      %p100 = por %p98, %p99
      %s101 = ssub.s32 %s21, %s40
      %s102 = ssub.s32 %s22, %s36
      %s103 = sor.u32 %s101, %s102
      %p104 = scmp.eq.s32.totalorder %s103, 0
      %s106 = sadd.s32 %s105, 1
      %s107 = scalar_select %p104, %s105, %s106
      %p110 = pneg %p104
      %p111 = scmp.eq.s32.totalorder %s14, 1
      %p112 = por %p110, %p111
      %p113 = scmp.ne.s32.totalorder %s105, %s108
      %p114 = scmp.eq.s32.totalorder %s14, 0
      %p115 = por %p113, %p114
      %p116 = scmp.ne.s32.totalorder %s105, %s108
      %p117 = scmp.eq.s32.totalorder %s19, 1
      %p118 = por %p116, %p117
      %p119 = scmp.ne.s32.totalorder %s108, %s109
      %p120 = scmp.eq.s32.totalorder %s19, 0
      %p121 = por %p119, %p120
      %p122 = scmp.ne.s32.totalorder %s108, %s109
      %p123 = scmp.eq.s32.totalorder %s20, 1
      %p124 = por %p122, %p123
      %p126 = scmp.ne.s32.totalorder %s109, %s125
      %p127 = scmp.eq.s32.totalorder %s20, 0
      %p128 = por %p126, %p127
      %p129 = scmp.le.s32.totalorder 1, %s14
      %p130 = scmp.lt.s32.totalorder %s14, 3
      %p131 = pnand %p129, %p130
      %p132 = pneg %p131
      // Predicated region
      $region9: #{tpu_custom_call.1} parent=5 // pred_check
        _
      $region10: #{tpu_custom_call.1} parent=5 // pred_check_branch
        %134 = sbr.rel (%p131) target = $region12
      $region11: #{tpu_custom_call.1} parent=5 // pred_region
        %s135 = ssub.s32 %s14, 1
      $region12: #{tpu_custom_call.1} parent=5 // pred_fallthru
        _
      %p136 = scmp.lt.s32.totalorder %s14, 2
      // Predicated region
      $region13: #{tpu_custom_call.1} parent=5 // pred_check
        %p137 = pneg %p136
      $region14: #{tpu_custom_call.1} parent=5 // pred_check_branch
        %139 = sbr.rel (%p137) target = $region16
      $region15: #{tpu_custom_call.1} parent=5 // pred_region
        // Predicated region
        $region17: #{tpu_custom_call.1} parent=15 // pred_check
          %p140 = pneg %p57
        $region18: #{tpu_custom_call.1} parent=15 // pred_check_branch
          %142 = sbr.rel (%p140) target = $region20
        $region19: #{tpu_custom_call.1} parent=15 // pred_region
          %s143 = sand.u32 %s47, 1
          %s144 = scalar_lea.sflag [#allocation4], %s143
          %s145 = sand.u32 %s47, 1
          %s146 = smul.addr %s145, 8
          %s147 = scalar_lea.vmem [#allocation3], %s146
          %s148 = sadd.s32 %s22, %s23
          %s149 = smul.u32 2, %s148
          %s151 = ssub.s32 128, 128
          %152 = vsyncadd %s144, %s151
          %s153 = smul.addr %s21, 2
          %s154 = sadd.s32 %s149, %s153
          %s155 = smul.addr %s154, 64
          %s156 = scalar_lea.hbm %s0, %s155
          %s158 = sshll.u32 %s147, 4
          %s159 = int_to_ptr.vmem [resolvable:$true] %s158
          %161 = dma.hbm_to_vmem [thread:$0]  %s156, 128, %s159, %s144
        $region20: #{tpu_custom_call.1} parent=15 // pred_fallthru
          _
        // Predicated region
        $region21: #{tpu_custom_call.1} parent=15 // pred_check
          %p162 = pneg %p87
        $region22: #{tpu_custom_call.1} parent=15 // pred_check_branch
          %164 = sbr.rel (%p162) target = $region24
        $region23: #{tpu_custom_call.1} parent=15 // pred_region
          %s165 = sand.u32 %s77, 1
          %s166 = scalar_lea.sflag [#allocation6], %s165
          %s167 = sand.u32 %s77, 1
          %s168 = smul.addr %s167, 2
          %s169 = scalar_lea.vmem [#allocation5], %s168
          %s170 = sadd.s32 %s22, %s23
          %s171 = smul.u32 2, %s170
          %s173 = ssub.s32 32, 32
          %174 = vsyncadd %s166, %s173
          %s175 = smul.addr %s21, 2
          %s176 = sadd.s32 %s171, %s175
          %s177 = smul.addr %s176, 16
          %s178 = scalar_lea.hbm %s1, %s177
          %s180 = sshll.u32 %s169, 4
          %s181 = int_to_ptr.vmem [resolvable:$true] %s180
          %183 = dma.hbm_to_vmem [thread:$0]  %s178, 32, %s181, %s166
        $region24: #{tpu_custom_call.1} parent=15 // pred_fallthru
          _
      $region16: #{tpu_custom_call.1} parent=5 // pred_fallthru
        _
      %p184 = scmp.le.s32.totalorder 1, %s14
      %p185 = scmp.lt.s32.totalorder %s14, 3
      %p186 = pnand %p184, %p185
      %p187 = pneg %p186
      // Predicated region
      $region25: #{tpu_custom_call.1} parent=5 // pred_check
        _
      $region26: #{tpu_custom_call.1} parent=5 // pred_check_branch
        %189 = sbr.rel (%p186) target = $region28
      $region27: #{tpu_custom_call.1} parent=5 // pred_region
        %s190 = ssub.s32 %s14, 1
        %s191 = sand.u32 %s50, 1
        %s192 = scalar_lea.sflag [#allocation4], %s191
        %s193 = sand.u32 %s50, 1
        %s194 = smul.addr %s193, 8
        %s195 = scalar_lea.vmem [#allocation3], %s194
        // Predicated region
        $region29: #{tpu_custom_call.1} parent=27 // pred_check
          %p196 = pneg %p63
        $region30: #{tpu_custom_call.1} parent=27 // pred_check_branch
          %198 = sbr.rel (%p196) target = $region32
        $region31: #{tpu_custom_call.1} parent=27 // pred_region
          %199 = dma.done %s192, 128
        $region32: #{tpu_custom_call.1} parent=27 // pred_fallthru
          _
        %s200 = sand.u32 %s80, 1
        %s201 = scalar_lea.sflag [#allocation6], %s200
        %s202 = sand.u32 %s80, 1
        %s203 = smul.addr %s202, 2
        %s204 = scalar_lea.vmem [#allocation5], %s203
        // Predicated region
        $region33: #{tpu_custom_call.1} parent=27 // pred_check
          %p205 = pneg %p93
        $region34: #{tpu_custom_call.1} parent=27 // pred_check_branch
          %207 = sbr.rel (%p205) target = $region36
        $region35: #{tpu_custom_call.1} parent=27 // pred_region
          %208 = dma.done %s201, 32
        $region36: #{tpu_custom_call.1} parent=27 // pred_fallthru
          _
        %s209 = sand.u32 %s50, 1
        %s210 = scalar_lea.sflag [#allocation4], %s209
        %s211 = sand.u32 %s50, 1
        %s212 = smul.addr %s211, 8
        %s213 = scalar_lea.vmem [#allocation3], %s212
        %p214 = pneg %p63
        %p215 = pneg %p60
        %s216 = sand.u32 %s80, 1
        %s217 = scalar_lea.sflag [#allocation6], %s216
        %s218 = sand.u32 %s80, 1
        %s219 = smul.addr %s218, 2
        %s220 = scalar_lea.vmem [#allocation5], %s219
        %p221 = pneg %p93
        %p222 = pneg %p90
        %p223 = pneg %p121
        %p224 = pneg %p118
        %p225 = scmp.lt.s32.totalorder %s24, 1
        %s226 = scalar_select %p225, %s24, 1
        %p227 = scmp.lt.s32.totalorder %s25, 0
        %s228 = scalar_select %p227, %s25, 0
        %s229 = sadd.s32 %s228, %s226
        %s230 = scalar_lea.vmem %s2, %s229
        %s231 = sadd.s32 %s25, %s26
        %s232 = smul.u32 2, %s231
        %s233 = sadd.s32 %s25, %s26
        %s234 = smul.u32 2, %s233
        %p235 = scmp.lt.s32.totalorder %s24, 1
        %s236 = scalar_select %p235, %s24, 1
        %p237 = scmp.lt.s32.totalorder %s25, 0
        %s238 = scalar_select %p237, %s25, 0
        %s239 = sadd.s32 %s238, %s236
        %s240 = scalar_lea.vmem %s2, %s239
        %p241 = scmp.eq.s32.totalorder %s26, 0
        // Predicated region
        $region37: #{tpu_custom_call.1} parent=27 // pred_check
          %p242 = pneg %p241
        $region38: #{tpu_custom_call.1} parent=27 // pred_check_branch
          %244 = sbr.rel (%p242) target = $region40
        $region39: #{tpu_custom_call.1} parent=27 // pred_region
          %v245 = vlaneseq
          %vm246 = vcmp.ge.s32.totalorder %v245, 0
          %vm247 = vcmp.lt.s32.totalorder %v245, 256
          %vm248 = vmand %vm246, %vm247
          %249 = vst.msk [vmem:[#allocation2] sm:$0x3] %vm248, 0.0
        $region40: #{tpu_custom_call.1} parent=27 // pred_fallthru
          _
        %v250 = vld [vmem:[%s195] sm:$0xff]
        %v251 = vld [vmem:[%s204] sm:$0x3]
        %v252 = vlaneseq
        %v253 = vshrl.u32 %v252, 7
        %v254 = vlaneseq
        %v255 = vshrl.u32 %v254, 7
        %v256 = vsub.s32 0, %v255
        %v257 = vrot.slane %v251, %v256
        %v258 = vlaneseq
        %v259 = vshrl.u32 %v258, 7
        %v260 = vsub.s32 1, %v259
        %v261 = vrot.slane %v251, %v260
        %vm262 = vcmp.eq.s32.totalorder %v253, %v257
        %vm263 = vcmp.eq.s32.totalorder %v253, %v261
        %v265 = vcombine.high %v250, %v250
        %v267 = vsel %vm262, %v250, 0.0
        %v268 = vsel %vm263, %v265, 0.0
        %vm269 = vcmask 1043456
        %v270 = vsel %vm269, %v267, 0.0
        %v271 = vrot.slane %v270, 4
        %v272 = vadd.f32 %v270, %v271
        %v273 = vrot.slane %v272, 2
        %v274 = vadd.f32 %v272, %v273
        %v275 = vrot.slane %v274, 1
        %v276 = vadd.f32 %v274, %v275
        %v277 = vsel %vm269, %v268, 0.0
        %v278 = vrot.slane %v277, 4
        %v279 = vadd.f32 %v277, %v278
        %v280 = vrot.slane %v279, 2
        %v281 = vadd.f32 %v279, %v280
        %v282 = vrot.slane %v281, 1
        %v283 = vadd.f32 %v281, %v282
        %v284 = vld [vmem:[#allocation2] sm:$0x3]
        %v287 = vcombine.low %v276, %v283
        %v289 = vunpack.c.l.s4 1966171168
        %v290 = vunpack.c.0.s8 %v289
        %v291 = vlaneseq
        %v292 = vshrl.u32 %v291, 7
        %v293 = vsub.s32 %v290, %v292
        %v294 = vrot.slane %v287, %v293
        %v296 = vunpack.c.l.s4 1966171168
        %v297 = vunpack.c.0.s8 %v296
        %v298 = vlaneseq
        %v299 = vshrl.u32 %v298, 7
        %v300 = vsub.s32 %v297, %v299
        %v301 = vrot.slane %v294, %v300
        %v303 = vadd.f32 %v284, %v301
        %v304 = vlaneseq
        %vm305 = vcmp.ge.s32.totalorder %v304, 0
        %vm306 = vcmp.lt.s32.totalorder %v304, 256
        %vm307 = vmand %vm305, %vm306
        %308 = vst.msk [vmem:[#allocation2] sm:$0x3] %vm307, %v303
        // Predicated region
        $region41: #{tpu_custom_call.1} parent=27 // pred_check
          %p309 = pneg %p241
        $region42: #{tpu_custom_call.1} parent=27 // pred_check_branch
          %311 = sbr.rel (%p309) target = $region44
        $region43: #{tpu_custom_call.1} parent=27 // pred_region
          %v312 = vld [vmem:[#allocation2] sm:$0x3]
          %v314 = vlaneseq
          %v315 = vshrl.u32 %v314, 7
          %v316 = vsub.s32 0, %v315
          %v317 = vrot.slane %v312, %v316
          %v318 = vlaneseq
          %v319 = vshrl.u32 %v318, 7
          %v320 = vsub.s32 1, %v319
          %v321 = vrot.slane %v312, %v320
          %vm324 = vcmask 1040384
          %v325 = vsel %vm324, %v317, 0.0
          %v326 = vsel %vm324, %v321, 0.0
          %v327 = vadd.f32 %v325, %v326
          %328 = vadd.xlane.f32.xlu0 %v327
          %v329 = vpop.xlane.xlu0 %328
          %v330 = vrot.slane %v329, 4
          %v331 = vadd.f32 %v329, %v330
          %v332 = vrot.slane %v331, 2
          %v333 = vadd.f32 %v331, %v332
          %v334 = vrot.slane %v333, 1
          %v335 = vadd.f32 %v333, %v334
          %s336 = vtos %v335
          %v337 = vstv %s336
          %v338 = vsub.f32 0.0, %v337
          %vm339 = vcmask 0
          %340 = vst.msk [vmem:[%s240] sm:$0x1] %vm339, %v338
        $region44: #{tpu_custom_call.1} parent=27 // pred_fallthru
          _
        %p341 = scmp.lt.s32.totalorder %s24, 1
        %s342 = scalar_select %p341, %s24, 1
        %p343 = scmp.lt.s32.totalorder %s25, 0
        %s344 = scalar_select %p343, %s25, 0
        %s345 = sadd.s32 %s344, %s342
        %s346 = scalar_lea.vmem %s2, %s345
        // Predicated region
        $region45: #{tpu_custom_call.1} parent=27 // pred_check
          %p347 = pneg %p118
        $region46: #{tpu_custom_call.1} parent=27 // pred_check_branch
          %349 = sbr.rel (%p347) target = $region48
        $region47: #{tpu_custom_call.1} parent=27 // pred_region
          _
        $region48: #{tpu_custom_call.1} parent=27 // pred_fallthru
          _
      $region28: #{tpu_custom_call.1} parent=5 // pred_fallthru
        _
      %p350 = scmp.le.s32.totalorder 2, %s14
      // Predicated region
      $region49: #{tpu_custom_call.1} parent=5 // pred_check
        %p351 = pneg %p350
      $region50: #{tpu_custom_call.1} parent=5 // pred_check_branch
        %353 = sbr.rel (%p351) target = $region52
      $region51: #{tpu_custom_call.1} parent=5 // pred_region
        %s354 = ssub.s32 %s14, 2
        // Predicated region
        $region53: #{tpu_custom_call.1} parent=51 // pred_check
          %p355 = pneg %p124
        $region54: #{tpu_custom_call.1} parent=51 // pred_check_branch
          %357 = sbr.rel (%p355) target = $region56
        $region55: #{tpu_custom_call.1} parent=51 // pred_region
          %p358 = scmp.lt.s32.totalorder %s27, 1
          %s359 = scalar_select %p358, %s27, 1
          %p360 = scmp.lt.s32.totalorder %s28, 0
          %s361 = scalar_select %p360, %s28, 0
          %s362 = sadd.s32 %s361, %s359
          %s363 = scalar_lea.vmem %s2, %s362
        $region56: #{tpu_custom_call.1} parent=51 // pred_fallthru
          _
      $region52: #{tpu_custom_call.1} parent=5 // pred_fallthru
        _
    $region6: #{tpu_custom_call.1} parent=1 // loop_footer
      %s18 = sadd.s32 1, %s14
    $region7: #{tpu_custom_call.1} parent=1 // loop_footer_branch
      %13 = sbr.rel target = $region3
    $region8: #{tpu_custom_call.1} parent=1 // loop_exit
      _
    %364 = vsyncpa [#allocation4], 1
    %s365 = scalar_lea.sflag [#allocation4], 1
    %366 = vsyncpa %s365, 1
    %367 = vsyncpa [#allocation6], 1
    %s368 = scalar_lea.sflag [#allocation6], 1
    %369 = vsyncpa %s368, 1

</llo_original>
